<compile_context>
chip_gen: v6e
topology: v6e:2x2x1
jax: 0.10.0
libtpu: 0.0.40
codegen_flags: <defaults>
</compile_context>

<pallas_src>
import jax
import jax.numpy as jnp
import numpy as np
from jax.experimental import pallas as pl
from jax.experimental.pallas import tpu as pltpu


def _gconv_kernel(d_ref, e_ref, h_ref, w_ref, o_ref, hw_ref):
    # d_ref, e_ref : (Tb, N, N)  (compute dtype, e.g. bf16)
    # h_ref        : (N, M)      f32
    # w_ref        : (M, Mp)     f32 (lane-padded)
    # o_ref        : (1, N, Mp)  f32, resident accumulator across the T-chunk axis
    # hw_ref       : (N, Mp)     f32 VMEM scratch holding H @ W for this b
    tc = pl.program_id(1)

    @pl.when(tc == 0)
    def _():
        # H @ W depends only on b, not t -> compute once per batch element.
        hw_ref[...] = jnp.dot(h_ref[...], w_ref[...],
                              preferred_element_type=jnp.float32)
        # init running max to -inf (LeakyReLU outputs can be negative).
        o_ref[0] = jnp.full(o_ref.shape[1:], -jnp.inf, dtype=o_ref.dtype)

    Dm = d_ref[...]                     # (Tb, N, N)
    Em = e_ref[...]                     # (Tb, N, N)
    Tb, N, _ = Dm.shape
    Mp = hw_ref.shape[-1]

    # batched-over-t  D @ E  and  (D @ E) @ D  on the MXU, f32 accumulation
    de = jnp.einsum('tij,tjk->tik', Dm, Em,
                    preferred_element_type=jnp.float32)          # (Tb, N, N)
    ded = jnp.einsum('tij,tjk->tik', de.astype(Dm.dtype), Dm,
                     preferred_element_type=jnp.float32)         # (Tb, N, N)

    # Fuse the Tb small matmuls against HW into one (Tb*N, N) @ (N, Mp).
    # (Layout-preserving reshape: minor dim kept, leading dims merged.)
    val = jnp.dot(ded.reshape(Tb * N, N), hw_ref[...],
                  preferred_element_type=jnp.float32)            # (Tb*N, Mp)

    # LeakyReLU(0.1) on the VPU, then max over the t's of this chunk.
    act = jnp.where(val >= 0, val, 0.1 * val)
    chunk_max = jnp.max(act.reshape(Tb, N, Mp), axis=0)          # (N, Mp)

    o_ref[0] = jnp.maximum(o_ref[0], chunk_max.astype(o_ref.dtype))


def gconv_forward(H, D, E, W, *, t_block=None, compute_dtype=jnp.bfloat16):
    B, T, N, _ = D.shape
    M = H.shape[-1]

    # T-chunk size: full T for small T; for large T pick a VMEM-sized divisor
    # (budget ~2 inputs x 2 pipeline buffers x Tb*N*N*2B on v7x's 64 MiB VMEM).
    if t_block is None:
        t_block = T
    assert T % t_block == 0, "t_block must divide T"
    Tc = T // t_block

    # Lane-dense output: pad the weight's output dim up to a multiple of 128.
    LANE = 128
    Mp = ((M + LANE - 1) // LANE) * LANE
    Wp = jnp.pad(W.astype(jnp.float32), ((0, 0), (0, Mp - M))) if Mp != M \
        else W.astype(jnp.float32)

    # bf16 inputs for the dominant HBM streams; f32 accumulation on the MXU.
    D_c = D.astype(compute_dtype)
    E_c = E.astype(compute_dtype)
    H_f = H.astype(jnp.float32)

    out = pl.pallas_call(
        _gconv_kernel,
        out_shape=jax.ShapeDtypeStruct((B, N, Mp), jnp.float32),
        grid_spec=pltpu.PrefetchScalarGridSpec(
            num_scalar_prefetch=0,
            grid=(B, Tc),
            in_specs=[
                pl.BlockSpec((pl.Squeezed(), t_block, N, N),
                             lambda b, t: (b, t, 0, 0)),            # D
                pl.BlockSpec((pl.Squeezed(), t_block, N, N),
                             lambda b, t: (b, t, 0, 0)),            # E
                pl.BlockSpec((pl.Squeezed(), N, M),
                             lambda b, t: (b, 0, 0)),               # H
                pl.BlockSpec((M, Mp), lambda b, t: (0, 0)),          # W (padded)
            ],
            out_specs=pl.BlockSpec((1, N, Mp), lambda b, t: (b, 0, 0)),
            scratch_shapes=[pltpu.VMEM((N, Mp), jnp.float32)],       # HW scratch
        ),
        compiler_params=pltpu.CompilerParams(
            dimension_semantics=("parallel", "arbitrary"),
        ),
    )(D_c, E_c, H_f, Wp)

    return out[..., :M].astype(H.dtype)


def gconv_reference(H, D, E, W):
    x = jnp.einsum('btij,btjk,btkl,blm,md->btid', D, E, D, H, W)
    x = jnp.where(x >= 0, x, 0.1 * x)          # LeakyReLU(0.1)
    return jnp.max(x, axis=1)                  # AGG over t


if __name__ == "__main__":
    # Small deterministic shapes consistent with the forward's einsum.
    B, T, N, EMBED = 2, 4, 8, 32

    key = jax.random.PRNGKey(0)
    k_d, k_e, k_h, k_w = jax.random.split(key, 4)

    D = jax.random.normal(k_d, (B, T, N, N), dtype=jnp.float32)
    E = jax.random.normal(k_e, (B, T, N, N), dtype=jnp.float32)
    H = jax.random.normal(k_h, (B, N, EMBED), dtype=jnp.float32)

    # xavier_normal_ for Weight (embed_dim, embed_dim): std = sqrt(2/(fan_in+fan_out))
    xavier_std = float(np.sqrt(2.0 / (EMBED + EMBED)))
    W = xavier_std * jax.random.normal(k_w, (EMBED, EMBED), dtype=jnp.float32)

    out = jax.block_until_ready(gconv_forward(H, D, E, W))

    ref = gconv_reference(H, D, E, W)
    # Tolerance loosened because D/E are streamed as bfloat16 (f32 accumulation).
    np.testing.assert_allclose(np.asarray(out), np.asarray(ref),
                               rtol=3e-2, atol=5e-1)

    print("KERNEL_OK")
</pallas_src>

<mosaic_0001>
module attributes {stable_mosaic.version = 11 : i64} {
  func.func @_gconv_kernel(%arg0: i32, %arg1: i32, %arg2: memref<1x4x8x8xbf16, #tpu.memory_space<vmem>>, %arg3: memref<1x4x8x8xbf16, #tpu.memory_space<vmem>>, %arg4: memref<1x8x32xf32, #tpu.memory_space<vmem>>, %arg5: memref<32x128xf32, #tpu.memory_space<vmem>>, %arg6: memref<1x8x128xf32, #tpu.memory_space<vmem>>, %arg7: memref<8x128xf32, #tpu.memory_space<vmem>>) attributes {dimension_semantics = [#tpu.dimension_semantics<parallel>, #tpu.dimension_semantics<arbitrary>], iteration_bounds = array<i64: 2, 1>, scalar_prefetch = 0 : i64, scratch_operands = 1 : i64, tpu.core_type = #tpu.core_type<tc>, window_params = [{transform_indices = @transform_0, window_bounds = array<i64: 1, 4, 8, 8>}, {transform_indices = @transform_1, window_bounds = array<i64: 1, 4, 8, 8>}, {transform_indices = @transform_2, window_bounds = array<i64: 1, 8, 32>}, {pipeline_mode = #tpu.pipeline_mode<synchronous>, transform_indices = @transform_3, window_bounds = array<i64: 32, 128>}, {transform_indices = @transform_4, window_bounds = array<i64: 1, 8, 128>}]} {
    %c0_i32 = arith.constant 0 : i32
    %0 = arith.cmpi eq, %arg1, %c0_i32 : i32
    %1 = arith.extui %0 : i1 to i32
    %c0_i32_0 = arith.constant 0 : i32
    %2 = arith.cmpi ne, %1, %c0_i32_0 : i32
    scf.if %2 {
      %c0_21 = arith.constant 0 : index
      %c0_22 = arith.constant 0 : index
      %c0_23 = arith.constant 0 : index
      %26 = vector.load %arg4[%c0_21, %c0_22, %c0_23] : memref<1x8x32xf32, #tpu.memory_space<vmem>>, vector<1x8x32xf32>
      %27 = vector.shape_cast %26 : vector<1x8x32xf32> to vector<8x32xf32>
      %c0_24 = arith.constant 0 : index
      %c0_25 = arith.constant 0 : index
      %28 = vector.load %arg5[%c0_24, %c0_25] : memref<32x128xf32, #tpu.memory_space<vmem>>, vector<32x128xf32>
      %cst_26 = arith.constant dense<0.000000e+00> : vector<8x128xf32>
      %29 = tpu.matmul %27, %28, %cst_26 {dimension_numbers = #tpu.dot_dimension_numbers<[1], [0], [0], [1], [0, 0, 1, 1], [], []>} : vector<8x32xf32>, vector<32x128xf32>, vector<8x128xf32> -> vector<8x128xf32>
      %c0_27 = arith.constant 0 : index
      %c0_28 = arith.constant 0 : index
      %30 = vector.load %arg7[%c0_27, %c0_28] : memref<8x128xf32, #tpu.memory_space<vmem>>, vector<8x128xf32>
      tpu.vector_store %arg7[%c0_27, %c0_28], %29 {strides = array<i32>} : memref<8x128xf32, #tpu.memory_space<vmem>>, vector<8x128xf32>,
      %cst_29 = arith.constant 0xFF800000 : f32
      %31 = vector.broadcast %cst_29 : f32 to vector<8x128xf32>
      %c0_30 = arith.constant 0 : index
      %c0_31 = arith.constant 0 : index
      %c0_32 = arith.constant 0 : index
      %32 = vector.load %arg6[%c0_30, %c0_31, %c0_32] : memref<1x8x128xf32, #tpu.memory_space<vmem>>, vector<1x8x128xf32>
      %33 = vector.shape_cast %32 : vector<1x8x128xf32> to vector<8x128xf32>
      %34 = vector.shape_cast %31 : vector<8x128xf32> to vector<1x8x128xf32>
      tpu.vector_store %arg6[%c0_30, %c0_31, %c0_32], %34 {strides = array<i32>} : memref<1x8x128xf32, #tpu.memory_space<vmem>>, vector<1x8x128xf32>,
    } else {
    }
    %c0 = arith.constant 0 : index
    %c0_1 = arith.constant 0 : index
    %c0_2 = arith.constant 0 : index
    %c0_3 = arith.constant 0 : index
    %3 = vector.load %arg2[%c0, %c0_1, %c0_2, %c0_3] : memref<1x4x8x8xbf16, #tpu.memory_space<vmem>>, vector<1x4x8x8xbf16>
    %4 = vector.shape_cast %3 : vector<1x4x8x8xbf16> to vector<4x8x8xbf16>
    %c0_4 = arith.constant 0 : index
    %c0_5 = arith.constant 0 : index
    %c0_6 = arith.constant 0 : index
    %c0_7 = arith.constant 0 : index
    %5 = vector.load %arg3[%c0_4, %c0_5, %c0_6, %c0_7] : memref<1x4x8x8xbf16, #tpu.memory_space<vmem>>, vector<1x4x8x8xbf16>
    %6 = vector.shape_cast %5 : vector<1x4x8x8xbf16> to vector<4x8x8xbf16>
    "tpu.trace_start"() <{level = 10 : i32, message = "tij,tjk->tik"}> : () -> ()
    %cst = arith.constant dense<0.000000e+00> : vector<4x8x8xf32>
    %7 = tpu.matmul %4, %6, %cst {dimension_numbers = #tpu.dot_dimension_numbers<[2], [1], [1], [2], [0, 0, 0, 1, 1, 2], [0], [0]>} : vector<4x8x8xbf16>, vector<4x8x8xbf16>, vector<4x8x8xf32> -> vector<4x8x8xf32>
    "tpu.trace_stop"() : () -> ()
    %8 = arith.truncf %7 : vector<4x8x8xf32> to vector<4x8x8xbf16>
    "tpu.trace_start"() <{level = 10 : i32, message = "tij,tjk->tik"}> : () -> ()
    %cst_8 = arith.constant dense<0.000000e+00> : vector<4x8x8xf32>
    %9 = tpu.matmul %8, %4, %cst_8 {dimension_numbers = #tpu.dot_dimension_numbers<[2], [1], [1], [2], [0, 0, 0, 1, 1, 2], [0], [0]>} : vector<4x8x8xbf16>, vector<4x8x8xbf16>, vector<4x8x8xf32> -> vector<4x8x8xf32>
    "tpu.trace_stop"() : () -> ()
    %10 = vector.shape_cast %9 : vector<4x8x8xf32> to vector<32x8xf32>
    %c0_9 = arith.constant 0 : index
    %c0_10 = arith.constant 0 : index
    %11 = vector.load %arg7[%c0_9, %c0_10] : memref<8x128xf32, #tpu.memory_space<vmem>>, vector<8x128xf32>
    %cst_11 = arith.constant dense<0.000000e+00> : vector<32x128xf32>
    %12 = tpu.matmul %10, %11, %cst_11 {dimension_numbers = #tpu.dot_dimension_numbers<[1], [0], [0], [1], [0, 0, 1, 1], [], []>} : vector<32x8xf32>, vector<8x128xf32>, vector<32x128xf32> -> vector<32x128xf32>
    %cst_12 = arith.constant 0.000000e+00 : f32
    %13 = vector.broadcast %cst_12 : f32 to vector<32x128xf32>
    %14 = arith.cmpf oge, %12, %13 : vector<32x128xf32>
    %cst_13 = arith.constant 1.000000e-01 : f32
    %15 = vector.broadcast %cst_13 : f32 to vector<32x128xf32>
    %16 = arith.mulf %15, %12 : vector<32x128xf32>
    %17 = arith.select %14, %12, %16 : vector<32x128xi1>, vector<32x128xf32>
    %18 = vector.shape_cast %17 : vector<32x128xf32> to vector<4x8x128xf32>
    %cst_14 = arith.constant dense<0xFF800000> : vector<8x128xf32>
    %19 = vector.multi_reduction <maximumf>, %18, %cst_14 [0] : vector<4x8x128xf32> to vector<8x128xf32>
    %c0_15 = arith.constant 0 : index
    %c0_16 = arith.constant 0 : index
    %c0_17 = arith.constant 0 : index
    %20 = vector.load %arg6[%c0_15, %c0_16, %c0_17] : memref<1x8x128xf32, #tpu.memory_space<vmem>>, vector<1x8x128xf32>
    %21 = vector.shape_cast %20 : vector<1x8x128xf32> to vector<8x128xf32>
    %22 = arith.maximumf %21, %19 : vector<8x128xf32>
    %c0_18 = arith.constant 0 : index
    %c0_19 = arith.constant 0 : index
    %c0_20 = arith.constant 0 : index
    %23 = vector.load %arg6[%c0_18, %c0_19, %c0_20] : memref<1x8x128xf32, #tpu.memory_space<vmem>>, vector<1x8x128xf32>
    %24 = vector.shape_cast %23 : vector<1x8x128xf32> to vector<8x128xf32>
    %25 = vector.shape_cast %22 : vector<8x128xf32> to vector<1x8x128xf32>
    tpu.vector_store %arg6[%c0_18, %c0_19, %c0_20], %25 {strides = array<i32>} : memref<1x8x128xf32, #tpu.memory_space<vmem>>, vector<1x8x128xf32>,
    return
  }
  func.func @transform_0(%arg0: i32, %arg1: i32) -> (i32, i32, i32, i32) {
    %c0_i32 = arith.constant 0 : i32
    %c0_i32_0 = arith.constant 0 : i32
    %c0_i32_1 = arith.constant 0 : i32
    return %arg0, %arg1, %c0_i32, %c0_i32_0 : i32, i32, i32, i32
  }
  func.func @transform_1(%arg0: i32, %arg1: i32) -> (i32, i32, i32, i32) {
    %c0_i32 = arith.constant 0 : i32
    %c0_i32_0 = arith.constant 0 : i32
    %c0_i32_1 = arith.constant 0 : i32
    return %arg0, %arg1, %c0_i32, %c0_i32_0 : i32, i32, i32, i32
  }
  func.func @transform_2(%arg0: i32, %arg1: i32) -> (i32, i32, i32) {
    %c0_i32 = arith.constant 0 : i32
    %c0_i32_0 = arith.constant 0 : i32
    %c0_i32_1 = arith.constant 0 : i32
    return %arg0, %c0_i32, %c0_i32_0 : i32, i32, i32
  }
  func.func @transform_3(%arg0: i32, %arg1: i32) -> (i32, i32) {
    %c0_i32 = arith.constant 0 : i32
    %c0_i32_0 = arith.constant 0 : i32
    %c0_i32_1 = arith.constant 0 : i32
    return %c0_i32, %c0_i32_0 : i32, i32
  }
  func.func @transform_4(%arg0: i32, %arg1: i32) -> (i32, i32, i32) {
    %c0_i32 = arith.constant 0 : i32
    %c0_i32_0 = arith.constant 0 : i32
    %c0_i32_1 = arith.constant 0 : i32
    return %arg0, %c0_i32, %c0_i32_0 : i32, i32, i32
  }
}

</mosaic_0001>

<llo_original>
// kernel: tpu_custom_call.1
$region0: #{tpu_custom_call.1}
  #allocation0 [shape = 'u32[]', space=smem, size = 0x4, offset = 0x4, fixed_abs, tag = 'smem constant byte address 0x4 - core index']
  #allocation1 [shape = 'u32[144,128]{1,0:T(1,128)}', space=vmem, size = 0x12000, scoped, tag = 'internal scratch']
  #allocation2 [shape = 'f32[8,128]{1,0:T(8,128)}', space=vmem, size = 0x1000, scoped, tag = 'scratch operand']
  %s0 = inlined_call_operand.hbm [shape: bf16[2,4,8,8], index: 0, kind: input, shape index: {}]
  %s1 = inlined_call_operand.hbm [shape: bf16[2,4,8,8], index: 1, kind: input, shape index: {}]
  %s2 = inlined_call_operand.hbm [shape: f32[2,8,32], index: 2, kind: input, shape index: {}]
  %s3 = inlined_call_operand.hbm [shape: f32[32,128], index: 3, kind: input, shape index: {}]
  %s4 = inlined_call_operand.hbm [shape: f32[2,8,128], index: 4, kind: output, shape index: {}]
  %s5 = sld [smem:[#allocation0]]
  $region69: #{tpu_custom_call.1} parent=0
    _
  %s7 = ssub.s32 1, %s5
  %s8 = scalar_select 0, %s7, %s5
  $region1: #{tpu_custom_call.1} parent=0
    #allocation3 [shape = 'u8[16384]{0}', space=vmem, size = 0x4000, scoped, tag = 'input window, operand 0']
    #allocation4 [shape = 's32[2]{0}', space=sflag, size = 0x8, scoped, tag = 'scoped memory for tpu_custom_call.1']
    #allocation5 [shape = 's32[2]{0}', space=sflag, size = 0x8, scoped, tag = 'scoped memory for tpu_custom_call.1']
    #allocation6 [shape = 'u8[16384]{0}', space=vmem, size = 0x4000, scoped, tag = 'input window, operand 1']
    #allocation7 [shape = 's32[2]{0}', space=sflag, size = 0x8, scoped, tag = 'scoped memory for tpu_custom_call.1']
    #allocation8 [shape = 'u8[8192]{0}', space=vmem, size = 0x2000, scoped, tag = 'input window, operand 2']
    #allocation9 [shape = 'u8[16384]{0}', space=vmem, size = 0x4000, scoped, tag = 'input window, operand 3, single buffered']
    #allocation10 [shape = 's32[1]{0}', space=sflag, size = 0x4, scoped, tag = 'scoped memory for tpu_custom_call.1']
    #allocation11 [shape = 'u8[8192]{0}', space=vmem, size = 0x2000, scoped, tag = 'output window, operand 0']
    %9 = vsyncpa [#allocation4], 0
    %s10 = scalar_lea.sflag [#allocation4], 1
    %11 = vsyncpa %s10, 0
    %12 = vsyncpa [#allocation7], 0
    %s13 = scalar_lea.sflag [#allocation7], 1
    %14 = vsyncpa %s13, 0
    %15 = vsyncpa [#allocation10], 0
    %16 = vsyncpa [#allocation5], 0
    %s17 = scalar_lea.sflag [#allocation5], 1
    %18 = vsyncpa %s17, 0
    loop: start=0, step=1, limit=4
    $region2: #{tpu_custom_call.1} parent=1 // loop_pre_header
      _
    $region3: #{tpu_custom_call.1} parent=1 // loop_header
      %s20 = sphi 0, %s24
      %p21 = scmp.ge.s32.totalorder %s20, 4
      %s27 = sphi 0, %s39
      %s28 = sphi 0, %s35
      %s29 = sphi 0, %s27
      %s30 = sphi 0, %s28
      %s31 = sphi 0, %s29
      %s32 = sphi 0, %s30
      %s44 = sphi 0, %s46
      %s47 = sphi 0, %s44
      %s48 = sphi 0, %s47
      %s64 = sphi 0, %s48
      %s72 = sphi 0, %s74
      %s75 = sphi 0, %s72
      %s76 = sphi 0, %s75
      %s92 = sphi 0, %s76
      %s98 = sphi 0, %s100
      %s101 = sphi 0, %s98
      %s102 = sphi 0, %s101
      %s118 = sphi 0, %s102
      %s122 = sphi 0, %s122
      %s124 = sphi 0, %s122
      %s125 = sphi 0, %s124
      %s139 = sphi 0, %s125
      %s145 = sphi 0, %s147
      %s148 = sphi 0, %s145
      %s149 = sphi 0, %s148
      %s165 = sphi 0, %s149
    $region4: #{tpu_custom_call.1} parent=1 // loop_header_branch
      %23 = sbr.rel (%p21) target = $region8
    $region5: #{tpu_custom_call.1} parent=1 // loop_body
      %s25 = ssub.s32 %s20, 1
      %s26 = ssub.s32 %s20, 2
      %s33 = sadd.s32 1, %s28
      %p34 = scmp.ge.s32.totalorder %s33, 1
      %s35 = scalar_select %p34, 0, %s33
      %s36 = sadd.s32 1, %s27
      %s37 = scalar_select %p34, %s36, %s27
      %p38 = scmp.ge.s32.totalorder %s37, 2
      %s39 = scalar_select %p38, 0, %s37
      %s40 = ssub.s32 %s27, %s39
      %s41 = ssub.s32 %s28, %s35
      %s42 = sor.u32 %s40, %s41
      %p43 = scmp.eq.s32.totalorder %s42, 0
      %s45 = sadd.s32 %s44, 1
      %s46 = scalar_select %p43, %s44, %s45
      %p49 = pneg %p43
      %p50 = scmp.eq.s32.totalorder %s20, 1
      %p51 = por %p49, %p50
      %p52 = scmp.ne.s32.totalorder %s44, %s47
      %p53 = scmp.eq.s32.totalorder %s20, 0
      %p54 = por %p52, %p53
      %p55 = scmp.ne.s32.totalorder %s44, %s47
      %p56 = scmp.eq.s32.totalorder %s25, 1
      %p57 = por %p55, %p56
      %p58 = scmp.ne.s32.totalorder %s47, %s48
      %p59 = scmp.eq.s32.totalorder %s25, 0
      %p60 = por %p58, %p59
      %p61 = scmp.ne.s32.totalorder %s47, %s48
      %p62 = scmp.eq.s32.totalorder %s26, 1
      %p63 = por %p61, %p62
      %p65 = scmp.ne.s32.totalorder %s48, %s64
      %p66 = scmp.eq.s32.totalorder %s26, 0
      %p67 = por %p65, %p66
      %s68 = ssub.s32 %s27, %s39
      %s69 = ssub.s32 %s28, %s35
      %s70 = sor.u32 %s68, %s69
      %p71 = scmp.eq.s32.totalorder %s70, 0
      %s73 = sadd.s32 %s72, 1
      %s74 = scalar_select %p71, %s72, %s73
      %p77 = pneg %p71
      %p78 = scmp.eq.s32.totalorder %s20, 1
      %p79 = por %p77, %p78
      %p80 = scmp.ne.s32.totalorder %s72, %s75
      %p81 = scmp.eq.s32.totalorder %s20, 0
      %p82 = por %p80, %p81
      %p83 = scmp.ne.s32.totalorder %s72, %s75
      %p84 = scmp.eq.s32.totalorder %s25, 1
      %p85 = por %p83, %p84
      %p86 = scmp.ne.s32.totalorder %s75, %s76
      %p87 = scmp.eq.s32.totalorder %s25, 0
      %p88 = por %p86, %p87
      %p89 = scmp.ne.s32.totalorder %s75, %s76
      %p90 = scmp.eq.s32.totalorder %s26, 1
      %p91 = por %p89, %p90
      %p93 = scmp.ne.s32.totalorder %s76, %s92
      %p94 = scmp.eq.s32.totalorder %s26, 0
      %p95 = por %p93, %p94
      %s96 = ssub.s32 %s27, %s39
      %p97 = scmp.eq.s32.totalorder %s96, 0
      %s99 = sadd.s32 %s98, 1
      %s100 = scalar_select %p97, %s98, %s99
      %p103 = pneg %p97
      %p104 = scmp.eq.s32.totalorder %s20, 1
      %p105 = por %p103, %p104
      %p106 = scmp.ne.s32.totalorder %s98, %s101
      %p107 = scmp.eq.s32.totalorder %s20, 0
      %p108 = por %p106, %p107
      %p109 = scmp.ne.s32.totalorder %s98, %s101
      %p110 = scmp.eq.s32.totalorder %s25, 1
      %p111 = por %p109, %p110
      %p112 = scmp.ne.s32.totalorder %s101, %s102
      %p113 = scmp.eq.s32.totalorder %s25, 0
      %p114 = por %p112, %p113
      %p115 = scmp.ne.s32.totalorder %s101, %s102
      %p116 = scmp.eq.s32.totalorder %s26, 1
      %p117 = por %p115, %p116
      %p119 = scmp.ne.s32.totalorder %s102, %s118
      %p120 = scmp.eq.s32.totalorder %s26, 0
      %p121 = por %p119, %p120
      %s123 = sadd.s32 %s122, 1
      %p126 = scmp.eq.s32.totalorder %s20, 1
      %p127 = scmp.ne.s32.totalorder %s122, %s124
      %p128 = scmp.eq.s32.totalorder %s20, 0
      %p129 = por %p127, %p128
      %p130 = scmp.ne.s32.totalorder %s122, %s124
      %p131 = scmp.eq.s32.totalorder %s25, 1
      %p132 = por %p130, %p131
      %p133 = scmp.ne.s32.totalorder %s124, %s125
      %p134 = scmp.eq.s32.totalorder %s25, 0
      %p135 = por %p133, %p134
      %p136 = scmp.ne.s32.totalorder %s124, %s125
      %p137 = scmp.eq.s32.totalorder %s26, 1
      %p138 = por %p136, %p137
      %p140 = scmp.ne.s32.totalorder %s125, %s139
      %p141 = scmp.eq.s32.totalorder %s26, 0
      %p142 = por %p140, %p141
      %s143 = ssub.s32 %s27, %s39
      %p144 = scmp.eq.s32.totalorder %s143, 0
      %s146 = sadd.s32 %s145, 1
      %s147 = scalar_select %p144, %s145, %s146
      %p150 = pneg %p144
      %p151 = scmp.eq.s32.totalorder %s20, 1
      %p152 = por %p150, %p151
      %p153 = scmp.ne.s32.totalorder %s145, %s148
      %p154 = scmp.eq.s32.totalorder %s20, 0
      %p155 = por %p153, %p154
      %p156 = scmp.ne.s32.totalorder %s145, %s148
      %p157 = scmp.eq.s32.totalorder %s25, 1
      %p158 = por %p156, %p157
      %p159 = scmp.ne.s32.totalorder %s148, %s149
      %p160 = scmp.eq.s32.totalorder %s25, 0
      %p161 = por %p159, %p160
      %p162 = scmp.ne.s32.totalorder %s148, %s149
      %p163 = scmp.eq.s32.totalorder %s26, 1
      %p164 = por %p162, %p163
      %p166 = scmp.ne.s32.totalorder %s149, %s165
      %p167 = scmp.eq.s32.totalorder %s26, 0
      %p168 = por %p166, %p167
      %p169 = scmp.le.s32.totalorder 1, %s20
      %p170 = scmp.lt.s32.totalorder %s20, 3
      %p171 = pnand %p169, %p170
      %p172 = pneg %p171
      // Predicated region
      $region9: #{tpu_custom_call.1} parent=5 // pred_check
        _
      $region10: #{tpu_custom_call.1} parent=5 // pred_check_branch
        %174 = sbr.rel (%p171) target = $region12
      $region11: #{tpu_custom_call.1} parent=5 // pred_region
        %s175 = ssub.s32 %s20, 1
        // Predicated region
        $region13: #{tpu_custom_call.1} parent=11 // pred_check
          %p176 = pneg %p135
        $region14: #{tpu_custom_call.1} parent=11 // pred_check_branch
          %178 = sbr.rel (%p176) target = $region16
        $region15: #{tpu_custom_call.1} parent=11 // pred_region
          %s180 = ssub.s32 512, 512
          %181 = vsyncadd [#allocation10], %s180
          %s182 = sshll.u32 [#allocation9], 4
          %s183 = int_to_ptr.vmem [resolvable:$true] %s182
          %188 = dma.hbm_to_vmem [thread:$0]  %s3, 512, %s183, [#allocation10], 128, 128, 8
        $region16: #{tpu_custom_call.1} parent=11 // pred_fallthru
          _
      $region12: #{tpu_custom_call.1} parent=5 // pred_fallthru
        _
      %p189 = scmp.lt.s32.totalorder %s20, 2
      // Predicated region
      $region17: #{tpu_custom_call.1} parent=5 // pred_check
        %p190 = pneg %p189
      $region18: #{tpu_custom_call.1} parent=5 // pred_check_branch
        %192 = sbr.rel (%p190) target = $region20
      $region19: #{tpu_custom_call.1} parent=5 // pred_region
        // Predicated region
        $region21: #{tpu_custom_call.1} parent=19 // pred_check
          %p193 = pneg %p54
        $region22: #{tpu_custom_call.1} parent=19 // pred_check_branch
          %195 = sbr.rel (%p193) target = $region24
        $region23: #{tpu_custom_call.1} parent=19 // pred_region
          %s196 = sand.u32 %s44, 1
          %s197 = scalar_lea.sflag [#allocation4], %s196
          %s198 = sand.u32 %s44, 1
          %s199 = smul.addr %s198, 16
          %s200 = scalar_lea.vmem [#allocation3], %s199
          %s201 = smul.u32 4, %s28
          %s203 = ssub.s32 256, 256
          %204 = vsyncadd %s197, %s203
          %s205 = smul.addr %s27, 4
          %s206 = sadd.s32 %s201, %s205
          %s207 = smul.addr %s206, 64
          %s208 = scalar_lea.hbm %s0, %s207
          %s209 = sshll.u32 %s200, 4
          %s210 = int_to_ptr.vmem [resolvable:$true] %s209
          %215 = dma.hbm_to_vmem [thread:$0]  %s208, 256, %s210, %s197, 64, 64, 4
        $region24: #{tpu_custom_call.1} parent=19 // pred_fallthru
          _
        // Predicated region
        $region25: #{tpu_custom_call.1} parent=19 // pred_check
          %p216 = pneg %p82
        $region26: #{tpu_custom_call.1} parent=19 // pred_check_branch
          %218 = sbr.rel (%p216) target = $region28
        $region27: #{tpu_custom_call.1} parent=19 // pred_region
          %s219 = sand.u32 %s20, 1
          %s220 = scalar_lea.sflag [#allocation7], %s219
          %s221 = sand.u32 %s72, 1
          %s222 = smul.addr %s221, 16
          %s223 = scalar_lea.vmem [#allocation6], %s222
          %s224 = smul.u32 4, %s28
          %s226 = ssub.s32 256, 256
          %227 = vsyncadd %s220, %s226
          %s228 = smul.addr %s27, 4
          %s229 = sadd.s32 %s224, %s228
          %s230 = smul.addr %s229, 64
          %s231 = scalar_lea.hbm %s1, %s230
          %s232 = sshll.u32 %s223, 4
          %s233 = int_to_ptr.vmem [resolvable:$true] %s232
          %238 = dma.hbm_to_vmem [thread:$0]  %s231, 256, %s233, %s220, 64, 64, 4
        $region28: #{tpu_custom_call.1} parent=19 // pred_fallthru
          _
        // Predicated region
        $region29: #{tpu_custom_call.1} parent=19 // pred_check
          %p239 = pneg %p108
        $region30: #{tpu_custom_call.1} parent=19 // pred_check_branch
          %241 = sbr.rel (%p239) target = $region32
        $region31: #{tpu_custom_call.1} parent=19 // pred_region
          %s242 = sand.u32 %s20, 1
          %s243 = scalar_lea.sflag [#allocation7], %s242
          %s244 = sand.u32 %s98, 1
          %s245 = smul.addr %s244, 8
          %s246 = scalar_lea.vmem [#allocation8], %s245
          %s248 = ssub.s32 128, 128
          %249 = vsyncadd %s243, %s248
          %s250 = smul.addr %s27, 128
          %s251 = scalar_lea.hbm %s2, %s250
          %s253 = sshll.u32 %s246, 4
          %s254 = int_to_ptr.vmem [resolvable:$true] %s253
          %256 = dma.hbm_to_vmem [thread:$0]  %s251, 128, %s254, %s243
        $region32: #{tpu_custom_call.1} parent=19 // pred_fallthru
          _
      $region20: #{tpu_custom_call.1} parent=5 // pred_fallthru
        _
      %p257 = scmp.le.s32.totalorder 1, %s20
      %p258 = scmp.lt.s32.totalorder %s20, 3
      %p259 = pnand %p257, %p258
      %p260 = pneg %p259
      // Predicated region
      $region33: #{tpu_custom_call.1} parent=5 // pred_check
        _
      $region34: #{tpu_custom_call.1} parent=5 // pred_check_branch
        %262 = sbr.rel (%p259) target = $region36
      $region35: #{tpu_custom_call.1} parent=5 // pred_region
        %s263 = ssub.s32 %s20, 1
        %s264 = sand.u32 %s47, 1
        %s265 = scalar_lea.sflag [#allocation4], %s264
        %s266 = sand.u32 %s47, 1
        %s267 = smul.addr %s266, 16
        %s268 = scalar_lea.vmem [#allocation3], %s267
        // Predicated region
        $region37: #{tpu_custom_call.1} parent=35 // pred_check
          %p269 = pneg %p60
        $region38: #{tpu_custom_call.1} parent=35 // pred_check_branch
          %271 = sbr.rel (%p269) target = $region40
        $region39: #{tpu_custom_call.1} parent=35 // pred_region
          %272 = dma.done %s265, 256
        $region40: #{tpu_custom_call.1} parent=35 // pred_fallthru
          _
        %s273 = sand.u32 %s25, 1
        %s274 = scalar_lea.sflag [#allocation7], %s273
        %s275 = sand.u32 %s75, 1
        %s276 = smul.addr %s275, 16
        %s277 = scalar_lea.vmem [#allocation6], %s276
        // Predicated region
        $region41: #{tpu_custom_call.1} parent=35 // pred_check
          %p278 = pneg %p88
        $region42: #{tpu_custom_call.1} parent=35 // pred_check_branch
          %280 = sbr.rel (%p278) target = $region44
        $region43: #{tpu_custom_call.1} parent=35 // pred_region
          %281 = dma.done %s274, 256
        $region44: #{tpu_custom_call.1} parent=35 // pred_fallthru
          _
        %s282 = sand.u32 %s25, 1
        %s283 = scalar_lea.sflag [#allocation7], %s282
        %s284 = sand.u32 %s101, 1
        %s285 = smul.addr %s284, 8
        %s286 = scalar_lea.vmem [#allocation8], %s285
        // Predicated region
        $region45: #{tpu_custom_call.1} parent=35 // pred_check
          %p287 = pneg %p114
        $region46: #{tpu_custom_call.1} parent=35 // pred_check_branch
          %289 = sbr.rel (%p287) target = $region48
        $region47: #{tpu_custom_call.1} parent=35 // pred_region
          %290 = dma.done %s283, 128
        $region48: #{tpu_custom_call.1} parent=35 // pred_fallthru
          _
        // Predicated region
        $region49: #{tpu_custom_call.1} parent=35 // pred_check
          %p291 = pneg %p135
        $region50: #{tpu_custom_call.1} parent=35 // pred_check_branch
          %293 = sbr.rel (%p291) target = $region52
        $region51: #{tpu_custom_call.1} parent=35 // pred_region
          %294 = dma.done [#allocation10], 512
        $region52: #{tpu_custom_call.1} parent=35 // pred_fallthru
          _
        %s295 = sand.u32 %s47, 1
        %s296 = scalar_lea.sflag [#allocation4], %s295
        %s297 = sand.u32 %s47, 1
        %s298 = smul.addr %s297, 16
        %s299 = scalar_lea.vmem [#allocation3], %s298
        %p300 = pneg %p60
        %p301 = pneg %p57
        %s302 = sand.u32 %s25, 1
        %s303 = scalar_lea.sflag [#allocation7], %s302
        %s304 = sand.u32 %s75, 1
        %s305 = smul.addr %s304, 16
        %s306 = scalar_lea.vmem [#allocation6], %s305
        %p307 = pneg %p88
        %p308 = pneg %p85
        %s309 = sand.u32 %s25, 1
        %s310 = scalar_lea.sflag [#allocation7], %s309
        %s311 = sand.u32 %s101, 1
        %s312 = smul.addr %s311, 8
        %s313 = scalar_lea.vmem [#allocation8], %s312
        %p314 = pneg %p114
        %p315 = pneg %p111
        %p316 = pneg %p135
        %p317 = pneg %p132
        %p318 = pneg %p161
        %p319 = pneg %p158
        %s320 = sand.u32 %s148, 1
        %s321 = scalar_lea.sflag [#allocation5], %s320
        %s322 = sand.u32 %s148, 1
        %s323 = smul.addr %s322, 8
        %s324 = scalar_lea.vmem [#allocation11], %s323
        %s325 = smul.u32 4, %s30
        %s326 = smul.u32 4, %s30
        %p328 = scmp.eq.s32.totalorder %s30, 0
        // Predicated region
        $region53: #{tpu_custom_call.1} parent=35 // pred_check
          %p329 = pneg %p328
        $region54: #{tpu_custom_call.1} parent=35 // pred_check_branch
          %331 = sbr.rel (%p329) target = $region56
        $region55: #{tpu_custom_call.1} parent=35 // pred_region
          %v332 = vld [vmem:[%s286] sm:$0xff]
          %v333 = vld [vmem:[#allocation9] sm:$0xff]
          %v334 = vld [vmem:[#allocation9 + $0x8] sm:$0xff]
          %v335 = vld [vmem:[#allocation9 + $0x10] sm:$0xff]
          %v336 = vld [vmem:[#allocation9 + $0x18] sm:$0xff]
          %vm337 = vcmask 261120
          %v339 = vsel %vm337, %v332, 0
          %341 = vmatprep.subr.mxu0 0.0
          %342 = vmatpush1.msra.mxu0 0.0
          %343 = vmatprep.subr.mxu0 0.0
          %344 = vmatpush1.msra.mxu0 0.0
          %345 = vmatprep.subr.mxu0 0.0
          %346 = vmatpush1.msra.mxu0 0.0
          %347 = vmatprep.subr.mxu0 0.0
          %348 = vmatpush1.msra.mxu0 0.0
          %349 = vmatprep.subr.mxu0 0.0
          %350 = vmatpush1.msra.mxu0 0.0
          %351 = vmatprep.subr.mxu0 0.0
          %352 = vmatpush1.msra.mxu0 0.0
          %353 = vmatprep.subr.mxu0 0.0
          %354 = vmatpush1.msra.mxu0 0.0
          %355 = vmatprep.subr.mxu0 0.0
          %356 = vmatpush1.msra.mxu0 0.0
          %357 = vmatprep.subr.mxu0 0.0
          %358 = vmatpush1.msra.mxu0 0.0
          %359 = vmatprep.subr.mxu0 0.0
          %360 = vmatpush1.msra.mxu0 0.0
          %361 = vmatprep.subr.mxu0 0.0
          %362 = vmatpush1.msra.mxu0 0.0
          %363 = vmatprep.subr.mxu0 0.0
          %364 = vmatpush1.msra.mxu0 0.0
          %365 = vmatprep.subr.mxu0 0.0
          %366 = vmatpush1.msra.mxu0 %v336
          %367 = vmatprep.subr.mxu0 0.0
          %368 = vmatpush1.msra.mxu0 %v335
          %369 = vmatprep.subr.mxu0 0.0
          %370 = vmatpush1.msra.mxu0 %v334
          %371 = vmatprep.subr.mxu0 0.0
          %372 = vmatpush1.msra.mxu0 %v333
          %373 = vmatprep.subr.mxu0 0.0
          %374 = vmatpush2.msra.mxu0 0.0
          %375 = vmatprep.subr.mxu0 0.0
          %376 = vmatpush2.msra.mxu0 0.0
          %377 = vmatprep.subr.mxu0 0.0
          %378 = vmatpush2.msra.mxu0 0.0
          %379 = vmatprep.subr.mxu0 0.0
          %380 = vmatpush2.msra.mxu0 0.0
          %381 = vmatprep.subr.mxu0 0.0
          %382 = vmatpush2.msra.mxu0 0.0
          %383 = vmatprep.subr.mxu0 0.0
          %384 = vmatpush2.msra.mxu0 0.0
          %385 = vmatprep.subr.mxu0 0.0
          %386 = vmatpush2.msra.mxu0 0.0
          %387 = vmatprep.subr.mxu0 0.0
          %388 = vmatpush2.msra.mxu0 0.0
          %389 = vmatprep.subr.mxu0 0.0
          %390 = vmatpush2.msra.mxu0 0.0
          %391 = vmatprep.subr.mxu0 0.0
          %392 = vmatpush2.msra.mxu0 0.0
          %393 = vmatprep.subr.mxu0 0.0
          %394 = vmatpush2.msra.mxu0 0.0
          %395 = vmatprep.subr.mxu0 0.0
          %396 = vmatpush2.msra.mxu0 0.0
          %397 = vmatprep.subr.mxu0 0.0
          %398 = vmatpush2.msra.mxu0 0.0
          %399 = vmatprep.subr.mxu0 0.0
          %400 = vmatpush2.msra.mxu0 0.0
          %401 = vmatprep.subr.mxu0 0.0
          %402 = vmatpush2.msra.mxu0 0.0
          %403 = vmatprep.subr.mxu0 0.0
          %404 = vmatpush2.msra.mxu0 0.0
          %405 = vmatprep.mubr.f32.mxu0 0.0
          %406 = vmatmul.mubr.f32.gmra.mxu0 %v339
          %v407 = vpop.f32.mrf.mxu0
          %v408 = vadd.f32 0.0, %v407
          %v409 = vpop.f32.mrf.mxu0
          %410 = vdwg.mxu0
          %411 = vst [vmem:[#allocation2] sm:$0xff] %v408
          %412 = vst [vmem:[%s324] sm:$0xff] -inf
        $region56: #{tpu_custom_call.1} parent=35 // pred_fallthru
          _
        %v413 = vld [vmem:[%s268] sm:$0xf]
        %v414 = vld [vmem:[%s268 + $0x4] sm:$0xf]
        %v415 = vld [vmem:[%s268 + $0x8] sm:$0xf]
        %v416 = vld [vmem:[%s268 + $0xc] sm:$0xf]
        %v417 = vld [vmem:[%s277] sm:$0xf]
        %v418 = vld [vmem:[%s277 + $0x4] sm:$0xf]
        %v419 = vld [vmem:[%s277 + $0x8] sm:$0xf]
        %v420 = vld [vmem:[%s277 + $0xc] sm:$0xf]
        %vm421 = vcmask 64512
        %v423 = vsel %vm421, %v413, 0
        %vm425 = vcmask 1043456
        %v427 = vsel %vm425, %v417, 0
        %429 = vmatprep.subr.bf16.mxu0 0
        %430 = vmatpush1.bf16.msra.mxu0 0
        %431 = vmatprep.subr.bf16.mxu0 0
        %432 = vmatpush1.bf16.msra.mxu0 0
        %433 = vmatprep.subr.bf16.mxu0 0
        %434 = vmatpush1.bf16.msra.mxu0 0
        %435 = vmatprep.subr.bf16.mxu0 0
        %436 = vmatpush1.bf16.msra.mxu0 0
        %437 = vmatprep.subr.bf16.mxu0 0
        %438 = vmatpush1.bf16.msra.mxu0 0
        %439 = vmatprep.subr.bf16.mxu0 0
        %440 = vmatpush1.bf16.msra.mxu0 0
        %441 = vmatprep.subr.bf16.mxu0 0
        %442 = vmatpush1.bf16.msra.mxu0 0
        %443 = vmatprep.subr.bf16.mxu0 0
        %444 = vmatpush1.bf16.msra.mxu0 %v427
        %445 = vmatprep.subr.bf16.mxu0 0
        %446 = vmatpush2.bf16.msra.mxu0 0
        %447 = vmatprep.subr.bf16.mxu0 0
        %448 = vmatpush2.bf16.msra.mxu0 0
        %449 = vmatprep.subr.bf16.mxu0 0
        %450 = vmatpush2.bf16.msra.mxu0 0
        %451 = vmatprep.subr.bf16.mxu0 0
        %452 = vmatpush2.bf16.msra.mxu0 0
        %453 = vmatprep.subr.bf16.mxu0 0
        %454 = vmatpush2.bf16.msra.mxu0 0
        %455 = vmatprep.subr.bf16.mxu0 0
        %456 = vmatpush2.bf16.msra.mxu0 0
        %457 = vmatprep.subr.bf16.mxu0 0
        %458 = vmatpush2.bf16.msra.mxu0 0
        %459 = vmatprep.subr.bf16.mxu0 0
        %460 = vmatpush2.bf16.msra.mxu0 0
        %461 = vmatprep.mubr.bf16.mxu0 0
        %462 = vmatmul.mubr.bf16.gmra.mxu0 %v423
        %v463 = vpop.f32.mrf.mxu0
        %v464 = vadd.f32 0.0, %v463
        %v465 = vpop.f32.mrf.mxu0
        %v466 = vpop.f32.mrf.mxu0
        %v467 = vpop.f32.mrf.mxu0
        %468 = vdwg.mxu0
        %v470 = vsel %vm421, %v414, 0
        %v473 = vsel %vm425, %v418, 0
        %475 = vmatprep.subr.bf16.mxu0 0
        %476 = vmatpush1.bf16.msra.mxu0 0
        %477 = vmatprep.subr.bf16.mxu0 0
        %478 = vmatpush1.bf16.msra.mxu0 0
        %479 = vmatprep.subr.bf16.mxu0 0
        %480 = vmatpush1.bf16.msra.mxu0 0
        %481 = vmatprep.subr.bf16.mxu0 0
        %482 = vmatpush1.bf16.msra.mxu0 0
        %483 = vmatprep.subr.bf16.mxu0 0
        %484 = vmatpush1.bf16.msra.mxu0 0
        %485 = vmatprep.subr.bf16.mxu0 0
        %486 = vmatpush1.bf16.msra.mxu0 0
        %487 = vmatprep.subr.bf16.mxu0 0
        %488 = vmatpush1.bf16.msra.mxu0 0
        %489 = vmatprep.subr.bf16.mxu0 0
        %490 = vmatpush1.bf16.msra.mxu0 %v473
        %491 = vmatprep.subr.bf16.mxu0 0
        %492 = vmatpush2.bf16.msra.mxu0 0
        %493 = vmatprep.subr.bf16.mxu0 0
        %494 = vmatpush2.bf16.msra.mxu0 0
        %495 = vmatprep.subr.bf16.mxu0 0
        %496 = vmatpush2.bf16.msra.mxu0 0
        %497 = vmatprep.subr.bf16.mxu0 0
        %498 = vmatpush2.bf16.msra.mxu0 0
        %499 = vmatprep.subr.bf16.mxu0 0
        %500 = vmatpush2.bf16.msra.mxu0 0
        %501 = vmatprep.subr.bf16.mxu0 0
        %502 = vmatpush2.bf16.msra.mxu0 0
        %503 = vmatprep.subr.bf16.mxu0 0
        %504 = vmatpush2.bf16.msra.mxu0 0
        %505 = vmatprep.subr.bf16.mxu0 0
        %506 = vmatpush2.bf16.msra.mxu0 0
        %507 = vmatprep.mubr.bf16.mxu0 0
        %508 = vmatmul.mubr.bf16.gmra.mxu0 %v470
        %v509 = vpop.f32.mrf.mxu0
        %v510 = vadd.f32 0.0, %v509
        %v511 = vpop.f32.mrf.mxu0
        %v512 = vpop.f32.mrf.mxu0
        %v513 = vpop.f32.mrf.mxu0
        %514 = vdwg.mxu0
        %v516 = vsel %vm421, %v415, 0
        %v519 = vsel %vm425, %v419, 0
        %521 = vmatprep.subr.bf16.mxu0 0
        %522 = vmatpush1.bf16.msra.mxu0 0
        %523 = vmatprep.subr.bf16.mxu0 0
        %524 = vmatpush1.bf16.msra.mxu0 0
        %525 = vmatprep.subr.bf16.mxu0 0
        %526 = vmatpush1.bf16.msra.mxu0 0
        %527 = vmatprep.subr.bf16.mxu0 0
        %528 = vmatpush1.bf16.msra.mxu0 0
        %529 = vmatprep.subr.bf16.mxu0 0
        %530 = vmatpush1.bf16.msra.mxu0 0
        %531 = vmatprep.subr.bf16.mxu0 0
        %532 = vmatpush1.bf16.msra.mxu0 0
        %533 = vmatprep.subr.bf16.mxu0 0
        %534 = vmatpush1.bf16.msra.mxu0 0
        %535 = vmatprep.subr.bf16.mxu0 0
        %536 = vmatpush1.bf16.msra.mxu0 %v519
        %537 = vmatprep.subr.bf16.mxu0 0
        %538 = vmatpush2.bf16.msra.mxu0 0
        %539 = vmatprep.subr.bf16.mxu0 0
        %540 = vmatpush2.bf16.msra.mxu0 0
        %541 = vmatprep.subr.bf16.mxu0 0
        %542 = vmatpush2.bf16.msra.mxu0 0
        %543 = vmatprep.subr.bf16.mxu0 0
        %544 = vmatpush2.bf16.msra.mxu0 0
        %545 = vmatprep.subr.bf16.mxu0 0
        %546 = vmatpush2.bf16.msra.mxu0 0
        %547 = vmatprep.subr.bf16.mxu0 0
        %548 = vmatpush2.bf16.msra.mxu0 0
        %549 = vmatprep.subr.bf16.mxu0 0
        %550 = vmatpush2.bf16.msra.mxu0 0
        %551 = vmatprep.subr.bf16.mxu0 0
        %552 = vmatpush2.bf16.msra.mxu0 0
        %553 = vmatprep.mubr.bf16.mxu0 0
        %554 = vmatmul.mubr.bf16.gmra.mxu0 %v516
        %v555 = vpop.f32.mrf.mxu0
        %v556 = vadd.f32 0.0, %v555
        %v557 = vpop.f32.mrf.mxu0
        %v558 = vpop.f32.mrf.mxu0
        %v559 = vpop.f32.mrf.mxu0
        %560 = vdwg.mxu0
        %v562 = vsel %vm421, %v416, 0
        %v565 = vsel %vm425, %v420, 0
        %567 = vmatprep.subr.bf16.mxu0 0
        %568 = vmatpush1.bf16.msra.mxu0 0
        %569 = vmatprep.subr.bf16.mxu0 0
        %570 = vmatpush1.bf16.msra.mxu0 0
        %571 = vmatprep.subr.bf16.mxu0 0
        %572 = vmatpush1.bf16.msra.mxu0 0
        %573 = vmatprep.subr.bf16.mxu0 0
        %574 = vmatpush1.bf16.msra.mxu0 0
        %575 = vmatprep.subr.bf16.mxu0 0
        %576 = vmatpush1.bf16.msra.mxu0 0
        %577 = vmatprep.subr.bf16.mxu0 0
        %578 = vmatpush1.bf16.msra.mxu0 0
        %579 = vmatprep.subr.bf16.mxu0 0
        %580 = vmatpush1.bf16.msra.mxu0 0
        %581 = vmatprep.subr.bf16.mxu0 0
        %582 = vmatpush1.bf16.msra.mxu0 %v565
        %583 = vmatprep.subr.bf16.mxu0 0
        %584 = vmatpush2.bf16.msra.mxu0 0
        %585 = vmatprep.subr.bf16.mxu0 0
        %586 = vmatpush2.bf16.msra.mxu0 0
        %587 = vmatprep.subr.bf16.mxu0 0
        %588 = vmatpush2.bf16.msra.mxu0 0
        %589 = vmatprep.subr.bf16.mxu0 0
        %590 = vmatpush2.bf16.msra.mxu0 0
        %591 = vmatprep.subr.bf16.mxu0 0
        %592 = vmatpush2.bf16.msra.mxu0 0
        %593 = vmatprep.subr.bf16.mxu0 0
        %594 = vmatpush2.bf16.msra.mxu0 0
        %595 = vmatprep.subr.bf16.mxu0 0
        %596 = vmatpush2.bf16.msra.mxu0 0
        %597 = vmatprep.subr.bf16.mxu0 0
        %598 = vmatpush2.bf16.msra.mxu0 0
        %599 = vmatprep.mubr.bf16.mxu0 0
        %600 = vmatmul.mubr.bf16.gmra.mxu0 %v562
        %v601 = vpop.f32.mrf.mxu0
        %v602 = vadd.f32 0.0, %v601
        %v603 = vpop.f32.mrf.mxu0
        %v604 = vpop.f32.mrf.mxu0
        %v605 = vpop.f32.mrf.mxu0
        %606 = vdwg.mxu0
        %v607 = vpack.c.bf16 %v464, %v464
        %v608 = vpack.c.bf16 %v510, %v510
        %v609 = vpack.c.bf16 %v556, %v556
        %v610 = vpack.c.bf16 %v602, %v602
        %v612 = vsel %vm421, %v607, 0
        %v614 = vsel %vm425, %v413, 0
        %616 = vmatprep.subr.bf16.mxu0 0
        %617 = vmatpush1.bf16.msra.mxu0 0
        %618 = vmatprep.subr.bf16.mxu0 0
        %619 = vmatpush1.bf16.msra.mxu0 0
        %620 = vmatprep.subr.bf16.mxu0 0
        %621 = vmatpush1.bf16.msra.mxu0 0
        %622 = vmatprep.subr.bf16.mxu0 0
        %623 = vmatpush1.bf16.msra.mxu0 0
        %624 = vmatprep.subr.bf16.mxu0 0
        %625 = vmatpush1.bf16.msra.mxu0 0
        %626 = vmatprep.subr.bf16.mxu0 0
        %627 = vmatpush1.bf16.msra.mxu0 0
        %628 = vmatprep.subr.bf16.mxu0 0
        %629 = vmatpush1.bf16.msra.mxu0 0
        %630 = vmatprep.subr.bf16.mxu0 0
        %631 = vmatpush1.bf16.msra.mxu0 %v614
        %632 = vmatprep.subr.bf16.mxu0 0
        %633 = vmatpush2.bf16.msra.mxu0 0
        %634 = vmatprep.subr.bf16.mxu0 0
        %635 = vmatpush2.bf16.msra.mxu0 0
        %636 = vmatprep.subr.bf16.mxu0 0
        %637 = vmatpush2.bf16.msra.mxu0 0
        %638 = vmatprep.subr.bf16.mxu0 0
        %639 = vmatpush2.bf16.msra.mxu0 0
        %640 = vmatprep.subr.bf16.mxu0 0
        %641 = vmatpush2.bf16.msra.mxu0 0
        %642 = vmatprep.subr.bf16.mxu0 0
        %643 = vmatpush2.bf16.msra.mxu0 0
        %644 = vmatprep.subr.bf16.mxu0 0
        %645 = vmatpush2.bf16.msra.mxu0 0
        %646 = vmatprep.subr.bf16.mxu0 0
        %647 = vmatpush2.bf16.msra.mxu0 0
        %648 = vmatprep.mubr.bf16.mxu0 0
        %649 = vmatmul.mubr.bf16.gmra.mxu0 %v612
        %v650 = vpop.f32.mrf.mxu0
        %v651 = vadd.f32 0.0, %v650
        %v652 = vpop.f32.mrf.mxu0
        %v653 = vpop.f32.mrf.mxu0
        %v654 = vpop.f32.mrf.mxu0
        %655 = vdwg.mxu0
        %v657 = vsel %vm421, %v608, 0
        %v659 = vsel %vm425, %v414, 0
        %661 = vmatprep.subr.bf16.mxu0 0
        %662 = vmatpush1.bf16.msra.mxu0 0
        %663 = vmatprep.subr.bf16.mxu0 0
        %664 = vmatpush1.bf16.msra.mxu0 0
        %665 = vmatprep.subr.bf16.mxu0 0
        %666 = vmatpush1.bf16.msra.mxu0 0
        %667 = vmatprep.subr.bf16.mxu0 0
        %668 = vmatpush1.bf16.msra.mxu0 0
        %669 = vmatprep.subr.bf16.mxu0 0
        %670 = vmatpush1.bf16.msra.mxu0 0
        %671 = vmatprep.subr.bf16.mxu0 0
        %672 = vmatpush1.bf16.msra.mxu0 0
        %673 = vmatprep.subr.bf16.mxu0 0
        %674 = vmatpush1.bf16.msra.mxu0 0
        %675 = vmatprep.subr.bf16.mxu0 0
        %676 = vmatpush1.bf16.msra.mxu0 %v659
        %677 = vmatprep.subr.bf16.mxu0 0
        %678 = vmatpush2.bf16.msra.mxu0 0
        %679 = vmatprep.subr.bf16.mxu0 0
        %680 = vmatpush2.bf16.msra.mxu0 0
        %681 = vmatprep.subr.bf16.mxu0 0
        %682 = vmatpush2.bf16.msra.mxu0 0
        %683 = vmatprep.subr.bf16.mxu0 0
        %684 = vmatpush2.bf16.msra.mxu0 0
        %685 = vmatprep.subr.bf16.mxu0 0
        %686 = vmatpush2.bf16.msra.mxu0 0
        %687 = vmatprep.subr.bf16.mxu0 0
        %688 = vmatpush2.bf16.msra.mxu0 0
        %689 = vmatprep.subr.bf16.mxu0 0
        %690 = vmatpush2.bf16.msra.mxu0 0
        %691 = vmatprep.subr.bf16.mxu0 0
        %692 = vmatpush2.bf16.msra.mxu0 0
        %693 = vmatprep.mubr.bf16.mxu0 0
        %694 = vmatmul.mubr.bf16.gmra.mxu0 %v657
        %v695 = vpop.f32.mrf.mxu0
        %v696 = vadd.f32 0.0, %v695
        %v697 = vpop.f32.mrf.mxu0
        %v698 = vpop.f32.mrf.mxu0
        %v699 = vpop.f32.mrf.mxu0
        %700 = vdwg.mxu0
        %v702 = vsel %vm421, %v609, 0
        %v704 = vsel %vm425, %v415, 0
        %706 = vmatprep.subr.bf16.mxu0 0
        %707 = vmatpush1.bf16.msra.mxu0 0
        %708 = vmatprep.subr.bf16.mxu0 0
        %709 = vmatpush1.bf16.msra.mxu0 0
        %710 = vmatprep.subr.bf16.mxu0 0
        %711 = vmatpush1.bf16.msra.mxu0 0
        %712 = vmatprep.subr.bf16.mxu0 0
        %713 = vmatpush1.bf16.msra.mxu0 0
        %714 = vmatprep.subr.bf16.mxu0 0
        %715 = vmatpush1.bf16.msra.mxu0 0
        %716 = vmatprep.subr.bf16.mxu0 0
        %717 = vmatpush1.bf16.msra.mxu0 0
        %718 = vmatprep.subr.bf16.mxu0 0
        %719 = vmatpush1.bf16.msra.mxu0 0
        %720 = vmatprep.subr.bf16.mxu0 0
        %721 = vmatpush1.bf16.msra.mxu0 %v704
        %722 = vmatprep.subr.bf16.mxu0 0
        %723 = vmatpush2.bf16.msra.mxu0 0
        %724 = vmatprep.subr.bf16.mxu0 0
        %725 = vmatpush2.bf16.msra.mxu0 0
        %726 = vmatprep.subr.bf16.mxu0 0
        %727 = vmatpush2.bf16.msra.mxu0 0
        %728 = vmatprep.subr.bf16.mxu0 0
        %729 = vmatpush2.bf16.msra.mxu0 0
        %730 = vmatprep.subr.bf16.mxu0 0
        %731 = vmatpush2.bf16.msra.mxu0 0
        %732 = vmatprep.subr.bf16.mxu0 0
        %733 = vmatpush2.bf16.msra.mxu0 0
        %734 = vmatprep.subr.bf16.mxu0 0
        %735 = vmatpush2.bf16.msra.mxu0 0
        %736 = vmatprep.subr.bf16.mxu0 0
        %737 = vmatpush2.bf16.msra.mxu0 0
        %738 = vmatprep.mubr.bf16.mxu0 0
        %739 = vmatmul.mubr.bf16.gmra.mxu0 %v702
        %v740 = vpop.f32.mrf.mxu0
        %v741 = vadd.f32 0.0, %v740
        %v742 = vpop.f32.mrf.mxu0
        %v743 = vpop.f32.mrf.mxu0
        %v744 = vpop.f32.mrf.mxu0
        %745 = vdwg.mxu0
        %v747 = vsel %vm421, %v610, 0
        %v749 = vsel %vm425, %v416, 0
        %751 = vmatprep.subr.bf16.mxu0 0
        %752 = vmatpush1.bf16.msra.mxu0 0
        %753 = vmatprep.subr.bf16.mxu0 0
        %754 = vmatpush1.bf16.msra.mxu0 0
        %755 = vmatprep.subr.bf16.mxu0 0
        %756 = vmatpush1.bf16.msra.mxu0 0
        %757 = vmatprep.subr.bf16.mxu0 0
        %758 = vmatpush1.bf16.msra.mxu0 0
        %759 = vmatprep.subr.bf16.mxu0 0
        %760 = vmatpush1.bf16.msra.mxu0 0
        %761 = vmatprep.subr.bf16.mxu0 0
        %762 = vmatpush1.bf16.msra.mxu0 0
        %763 = vmatprep.subr.bf16.mxu0 0
        %764 = vmatpush1.bf16.msra.mxu0 0
        %765 = vmatprep.subr.bf16.mxu0 0
        %766 = vmatpush1.bf16.msra.mxu0 %v749
        %767 = vmatprep.subr.bf16.mxu0 0
        %768 = vmatpush2.bf16.msra.mxu0 0
        %769 = vmatprep.subr.bf16.mxu0 0
        %770 = vmatpush2.bf16.msra.mxu0 0
        %771 = vmatprep.subr.bf16.mxu0 0
        %772 = vmatpush2.bf16.msra.mxu0 0
        %773 = vmatprep.subr.bf16.mxu0 0
        %774 = vmatpush2.bf16.msra.mxu0 0
        %775 = vmatprep.subr.bf16.mxu0 0
        %776 = vmatpush2.bf16.msra.mxu0 0
        %777 = vmatprep.subr.bf16.mxu0 0
        %778 = vmatpush2.bf16.msra.mxu0 0
        %779 = vmatprep.subr.bf16.mxu0 0
        %780 = vmatpush2.bf16.msra.mxu0 0
        %781 = vmatprep.subr.bf16.mxu0 0
        %782 = vmatpush2.bf16.msra.mxu0 0
        %783 = vmatprep.mubr.bf16.mxu0 0
        %784 = vmatmul.mubr.bf16.gmra.mxu0 %v747
        %v785 = vpop.f32.mrf.mxu0
        %v786 = vadd.f32 0.0, %v785
        %v787 = vpop.f32.mrf.mxu0
        %v788 = vpop.f32.mrf.mxu0
        %v789 = vpop.f32.mrf.mxu0
        %790 = vdwg.mxu0
        %v791 = vld [vmem:[#allocation2] sm:$0xff]
        %v793 = vsel %vm421, %v651, 0
        %v796 = vsel %vm421, %v696, 0
        %v799 = vsel %vm421, %v741, 0
        %v802 = vsel %vm421, %v786, 0
        %804 = vmatprep.subr.mxu0 0.0
        %805 = vmatpush1.msra.mxu0 0.0
        %806 = vmatprep.subr.mxu0 0.0
        %807 = vmatpush1.msra.mxu0 0.0
        %808 = vmatprep.subr.mxu0 0.0
        %809 = vmatpush1.msra.mxu0 0.0
        %810 = vmatprep.subr.mxu0 0.0
        %811 = vmatpush1.msra.mxu0 0.0
        %812 = vmatprep.subr.mxu0 0.0
        %813 = vmatpush1.msra.mxu0 0.0
        %814 = vmatprep.subr.mxu0 0.0
        %815 = vmatpush1.msra.mxu0 0.0
        %816 = vmatprep.subr.mxu0 0.0
        %817 = vmatpush1.msra.mxu0 0.0
        %818 = vmatprep.subr.mxu0 0.0
        %819 = vmatpush1.msra.mxu0 0.0
        %820 = vmatprep.subr.mxu0 0.0
        %821 = vmatpush1.msra.mxu0 0.0
        %822 = vmatprep.subr.mxu0 0.0
        %823 = vmatpush1.msra.mxu0 0.0
        %824 = vmatprep.subr.mxu0 0.0
        %825 = vmatpush1.msra.mxu0 0.0
        %826 = vmatprep.subr.mxu0 0.0
        %827 = vmatpush1.msra.mxu0 0.0
        %828 = vmatprep.subr.mxu0 0.0
        %829 = vmatpush1.msra.mxu0 0.0
        %830 = vmatprep.subr.mxu0 0.0
        %831 = vmatpush1.msra.mxu0 0.0
        %832 = vmatprep.subr.mxu0 0.0
        %833 = vmatpush1.msra.mxu0 0.0
        %834 = vmatprep.subr.mxu0 0.0
        %835 = vmatpush1.msra.mxu0 %v791
        %836 = vmatprep.subr.mxu0 0.0
        %837 = vmatpush2.msra.mxu0 0.0
        %838 = vmatprep.subr.mxu0 0.0
        %839 = vmatpush2.msra.mxu0 0.0
        %840 = vmatprep.subr.mxu0 0.0
        %841 = vmatpush2.msra.mxu0 0.0
        %842 = vmatprep.subr.mxu0 0.0
        %843 = vmatpush2.msra.mxu0 0.0
        %844 = vmatprep.subr.mxu0 0.0
        %845 = vmatpush2.msra.mxu0 0.0
        %846 = vmatprep.subr.mxu0 0.0
        %847 = vmatpush2.msra.mxu0 0.0
        %848 = vmatprep.subr.mxu0 0.0
        %849 = vmatpush2.msra.mxu0 0.0
        %850 = vmatprep.subr.mxu0 0.0
        %851 = vmatpush2.msra.mxu0 0.0
        %852 = vmatprep.subr.mxu0 0.0
        %853 = vmatpush2.msra.mxu0 0.0
        %854 = vmatprep.subr.mxu0 0.0
        %855 = vmatpush2.msra.mxu0 0.0
        %856 = vmatprep.subr.mxu0 0.0
        %857 = vmatpush2.msra.mxu0 0.0
        %858 = vmatprep.subr.mxu0 0.0
        %859 = vmatpush2.msra.mxu0 0.0
        %860 = vmatprep.subr.mxu0 0.0
        %861 = vmatpush2.msra.mxu0 0.0
        %862 = vmatprep.subr.mxu0 0.0
        %863 = vmatpush2.msra.mxu0 0.0
        %864 = vmatprep.subr.mxu0 0.0
        %865 = vmatpush2.msra.mxu0 0.0
        %866 = vmatprep.subr.mxu0 0.0
        %867 = vmatpush2.msra.mxu0 0.0
        %868 = vmatprep.mubr.f32.mxu0 0.0
        %869 = vmatmul.mubr.f32.gmra.mxu0 %v793
        %v870 = vpop.f32.mrf.mxu0
        %v871 = vadd.f32 0.0, %v870
        %v872 = vpop.f32.mrf.mxu0
        %873 = vmatprep.mubr.f32.mxu0 0.0
        %874 = vmatmul.mubr.f32.gmra.mxu0 %v796
        %v875 = vpop.f32.mrf.mxu0
        %v876 = vadd.f32 0.0, %v875
        %v877 = vpop.f32.mrf.mxu0
        %878 = vmatprep.mubr.f32.mxu0 0.0
        %879 = vmatmul.mubr.f32.gmra.mxu0 %v799
        %v880 = vpop.f32.mrf.mxu0
        %v881 = vadd.f32 0.0, %v880
        %v882 = vpop.f32.mrf.mxu0
        %883 = vmatprep.mubr.f32.mxu0 0.0
        %884 = vmatmul.mubr.f32.gmra.mxu0 %v802
        %v885 = vpop.f32.mrf.mxu0
        %v886 = vadd.f32 0.0, %v885
        %v887 = vpop.f32.mrf.mxu0
        %888 = vdwg.mxu0
        %vm889 = vcmp.ge.f32.partialorder %v871, 0.0
        %vm890 = vcmp.ge.f32.partialorder %v876, 0.0
        %vm891 = vcmp.ge.f32.partialorder %v881, 0.0
        %vm892 = vcmp.ge.f32.partialorder %v886, 0.0
        %v893 = vmul.f32 %v871, 0.1
        %v894 = vmul.f32 %v876, 0.1
        %v895 = vmul.f32 %v881, 0.1
        %v896 = vmul.f32 %v886, 0.1
        %v897 = vsel %vm889, %v871, %v893
        %v898 = vsel %vm890, %v876, %v894
        %v899 = vsel %vm891, %v881, %v895
        %v900 = vsel %vm892, %v886, %v896
        %v901 = vmax.f32 %v897, %v898
        %v902 = vmax.f32 %v899, %v900
        %v903 = vmax.f32 %v901, %v902
        %v904 = vld [vmem:[%s324] sm:$0xff]
        %v905 = vmax.f32 %v904, %v903
        %906 = vst [vmem:[%s324] sm:$0xff] %v905
        %s907 = sand.u32 %s148, 1
        %s908 = scalar_lea.sflag [#allocation5], %s907
        %s909 = sand.u32 %s148, 1
        %s910 = smul.addr %s909, 8
        %s911 = scalar_lea.vmem [#allocation11], %s910
        // Predicated region
        $region57: #{tpu_custom_call.1} parent=35 // pred_check
          %p912 = pneg %p158
        $region58: #{tpu_custom_call.1} parent=35 // pred_check_branch
          %914 = sbr.rel (%p912) target = $region60
        $region59: #{tpu_custom_call.1} parent=35 // pred_region
          %s916 = ssub.s32 128, 128
          %917 = vsyncadd %s908, %s916
          %s918 = smul.addr %s29, 128
          %s919 = scalar_lea.hbm %s4, %s918
          %s921 = sshll.u32 %s911, 4
          %s922 = int_to_ptr.vmem [resolvable:$true] %s921
          %924 = dma.vmem_to_hbm [thread:$0]  %s922, 128, %s919, %s908
        $region60: #{tpu_custom_call.1} parent=35 // pred_fallthru
          _
      $region36: #{tpu_custom_call.1} parent=5 // pred_fallthru
        _
      %p925 = scmp.le.s32.totalorder 2, %s20
      // Predicated region
      $region61: #{tpu_custom_call.1} parent=5 // pred_check
        %p926 = pneg %p925
      $region62: #{tpu_custom_call.1} parent=5 // pred_check_branch
        %928 = sbr.rel (%p926) target = $region64
      $region63: #{tpu_custom_call.1} parent=5 // pred_region
        %s929 = ssub.s32 %s20, 2
        // Predicated region
        $region65: #{tpu_custom_call.1} parent=63 // pred_check
          %p930 = pneg %p164
        $region66: #{tpu_custom_call.1} parent=63 // pred_check_branch
          %932 = sbr.rel (%p930) target = $region68
        $region67: #{tpu_custom_call.1} parent=63 // pred_region
          %s933 = sand.u32 %s149, 1
          %s934 = scalar_lea.sflag [#allocation5], %s933
          %s935 = sand.u32 %s149, 1
          %s936 = smul.addr %s935, 8
          %s937 = scalar_lea.vmem [#allocation11], %s936
          %938 = dma.done %s934, 128
        $region68: #{tpu_custom_call.1} parent=63 // pred_fallthru
          _
      $region64: #{tpu_custom_call.1} parent=5 // pred_fallthru
        _
    $region6: #{tpu_custom_call.1} parent=1 // loop_footer
      %s24 = sadd.s32 1, %s20
    $region7: #{tpu_custom_call.1} parent=1 // loop_footer_branch
      %19 = sbr.rel target = $region3
    $region8: #{tpu_custom_call.1} parent=1 // loop_exit
      _
    %939 = vsyncpa [#allocation4], 1
    %s940 = scalar_lea.sflag [#allocation4], 1
    %941 = vsyncpa %s940, 1
    %942 = vsyncpa [#allocation7], 1
    %s943 = scalar_lea.sflag [#allocation7], 1
    %944 = vsyncpa %s943, 1
    %945 = vsyncpa [#allocation10], 1
    %946 = vsyncpa [#allocation5], 1
    %s947 = scalar_lea.sflag [#allocation5], 1
    %948 = vsyncpa %s947, 1

</llo_original>
